<compile_context>
chip_gen: v6e
topology: v6e:2x2x1
jax: 0.10.0
libtpu: 0.0.40
codegen_flags: <defaults>
</compile_context>

<pallas_src>
import math

import jax
import jax.numpy as jnp
from jax.experimental import pallas as pl
from jax.experimental.pallas import tpu as pltpu


def _round_up(x, m):
    return ((x + m - 1) // m) * m


def _cdiv(a, b):
    return -(-a // b)


def _ffn_geglu_kernel(x_ref, w1h_ref, b1h_ref, w1g_ref, b1g_ref, w2_ref, b2_ref,
                      o_ref, acc_ref):
    """One (row-tile, inner-chunk) step of the GEGLU feed-forward.

    x_ref:   (tm, dim)          input rows (resident across inner chunks)
    w1h_ref: (dim, tc)          W1 columns for the 'hidden' half, chunk k
    b1h_ref: (1, tc)
    w1g_ref: (dim, tc)          W1 columns for the 'gate' half, chunk k
    b1g_ref: (1, tc)
    w2_ref:  (tc, dim_out)      W2 rows for chunk k
    b2_ref:  (1, dim_out)
    o_ref:   (tm, dim_out)      output tile (written on the last chunk only)
    acc_ref: (tm, dim_out) f32  VMEM accumulator over inner chunks
    """
    k = pl.program_id(1)

    @pl.when(k == 0)
    def _():
        acc_ref[...] = jnp.zeros_like(acc_ref)

    # Keep native dtype going into the MXU (bf16/f32 in, f32 accumulate).
    x = x_ref[...]
    hidden = jnp.dot(x, w1h_ref[...], preferred_element_type=jnp.float32)
    hidden = hidden + b1h_ref[...].astype(jnp.float32)
    gate = jnp.dot(x, w1g_ref[...], preferred_element_type=jnp.float32)
    gate = gate + b1g_ref[...].astype(jnp.float32)

    # Exact (erf) GELU in f32 — matches torch F.gelu(approximate='none').
    gelu_gate = 0.5 * gate * (1.0 + jax.lax.erf(gate * (1.0 / math.sqrt(2.0))))
    act = (hidden * gelu_gate).astype(w2_ref.dtype)

    # Dropout(p=0.0) is identity -> nothing to do.

    acc_ref[...] += jnp.dot(act, w2_ref[...], preferred_element_type=jnp.float32)

    @pl.when(k == pl.num_programs(1) - 1)
    def _():
        o_ref[...] = (acc_ref[...] + b2_ref[...].astype(jnp.float32)).astype(o_ref.dtype)


def _choose_inner_chunk(inner, tc):
    """Largest chunk <= tc that exactly tiles `inner`, keeping lanes 128-aligned."""
    if inner <= tc:
        return inner
    if inner % tc == 0:
        return tc
    if inner % 128 == 0:
        best = 128
        c = 128
        while c <= min(tc, inner):
            if inner % c == 0:
                best = c
            c += 128
        return best
    return inner  # fall back to no chunking (non-128-aligned inner dim)


def _choose_row_tile(M, tm, min_tiles=1):
    """Pick the row tile from the tile count so padding waste is bounded."""
    n_tiles = max(_cdiv(M, tm), 1)
    if min_tiles > 1 and M >= 512:
        # Keep >= min_tiles row tiles so multi-TensorCore chips (v7x) stay busy.
        n_tiles = max(n_tiles, min_tiles)
    tm_eff = _round_up(_cdiv(M, n_tiles), 8)  # sublane alignment
    M_pad = _round_up(M, tm_eff)
    return tm_eff, M_pad


def _default_config():
    """Generation-aware defaults for (tm, tc, vmem_limit_bytes, min_row_tiles)."""
    vmem_cap = None
    try:
        vmem_cap = int(pltpu.get_tpu_info().vmem_capacity_bytes)
    except Exception:
        vmem_cap = None
    kind = ""
    try:
        kind = jax.devices()[0].device_kind.lower()
    except Exception:
        kind = ""
    if vmem_cap is None:
        vmem_cap = 64 * 1024 * 1024  # conservative (v7x-sized) fallback

    if vmem_cap <= 64 * 1024 * 1024:
        # v7x-like: ~3.2 TB/s HBM -> ridge ~310 FLOP/byte; small VMEM, 2 TCs.
        tm, min_row_tiles = 512, 2
    elif "v6" in kind:
        # v6e: ridge ~650 FLOP/byte -> need large weight reuse per row tile.
        tm, min_row_tiles = 1024, 1
    else:
        # v5e / unknown 128-MiB chip: ridge ~240 FLOP/byte.
        tm, min_row_tiles = 512, 1

    tc = 1024
    # Never request the full physical VMEM; leave room for Mosaic scratch.
    vmem_limit = min(vmem_cap * 3 // 4, 100 * 1024 * 1024)
    return tm, tc, vmem_limit, min_row_tiles


def feed_forward_geglu(x, w1, b1, w2, b2, *, tm=None, tc=None, vmem_limit_bytes=None):
    """FeedForward (geglu) forward pass.

    x:  (B, S, dim)       channels-last, like torch Linear
    w1: (dim, 2*inner)    GEGLU.proj weight stored (in, out); [:, :inner]=hidden, [:, inner:]=gate
    b1: (2*inner,)
    w2: (inner, dim_out)
    b2: (dim_out,)
    """
    B, S, dim = x.shape
    two_inner = w1.shape[1]
    inner = two_inner // 2
    dim_out = w2.shape[1]
    M = B * S

    d_tm, d_tc, d_vmem, min_row_tiles = _default_config()
    tm = d_tm if tm is None else tm
    tc = d_tc if tc is None else tc
    vmem_limit_bytes = d_vmem if vmem_limit_bytes is None else vmem_limit_bytes

    tm_eff, M_pad = _choose_row_tile(M, tm, min_row_tiles)
    tc_eff = _choose_inner_chunk(inner, tc)
    n_k = inner // tc_eff  # number of inner chunks; gate half starts at block n_k

    x2d = x.reshape(M, dim)
    if M_pad != M:
        x2d = jnp.pad(x2d, ((0, M_pad - M), (0, 0)))

    # No weight slicing in the wrapper: W1/b1 are passed twice; the hidden and
    # gate halves are selected purely via BlockSpec index maps.
    b1_2d = b1.reshape(1, two_inner)
    b2_2d = b2.reshape(1, dim_out)

    grid = (M_pad // tm_eff, n_k)

    nbytes = lambda a: int(a.size) * a.dtype.itemsize
    cost = pl.CostEstimate(
        flops=2 * M * dim * two_inner + 2 * M * inner * dim_out,
        transcendentals=M * inner,
        bytes_accessed=(nbytes(x2d) + nbytes(w1) + nbytes(b1) + nbytes(w2)
                        + nbytes(b2) + M_pad * dim_out * x.dtype.itemsize),
    )

    out2d = pl.pallas_call(
        _ffn_geglu_kernel,
        out_shape=jax.ShapeDtypeStruct((M_pad, dim_out), x.dtype),
        grid_spec=pltpu.PrefetchScalarGridSpec(
            num_scalar_prefetch=0,
            grid=grid,
            in_specs=[
                pl.BlockSpec((tm_eff, dim), lambda i, k: (i, 0)),        # x rows (resident over k)
                pl.BlockSpec((dim, tc_eff), lambda i, k: (0, k)),        # W1 hidden chunk
                pl.BlockSpec((1, tc_eff), lambda i, k: (0, k)),          # b1 hidden chunk
                pl.BlockSpec((dim, tc_eff),
                             lambda i, k, nk=n_k: (0, k + nk)),          # W1 gate chunk
                pl.BlockSpec((1, tc_eff),
                             lambda i, k, nk=n_k: (0, k + nk)),          # b1 gate chunk
                pl.BlockSpec((tc_eff, dim_out), lambda i, k: (k, 0)),    # W2 chunk
                pl.BlockSpec((1, dim_out), lambda i, k: (0, 0)),         # b2 (grid-invariant)
            ],
            out_specs=pl.BlockSpec((tm_eff, dim_out), lambda i, k: (i, 0)),
            scratch_shapes=[pltpu.VMEM((tm_eff, dim_out), jnp.float32)],
        ),
        compiler_params=pltpu.CompilerParams(
            dimension_semantics=("parallel", "arbitrary"),
            vmem_limit_bytes=int(vmem_limit_bytes),
        ),
        cost_estimate=cost,
    )(x2d, w1, b1_2d, w1, b1_2d, w2, b2_2d)

    if M_pad != M:
        out2d = out2d[:M]
    return out2d.reshape(B, S, dim_out)


def _reference_ffn(x, w1, b1, w2, b2):
    xf = x.astype(jnp.float32)
    h = xf @ w1.astype(jnp.float32) + b1.astype(jnp.float32)
    hidden, gate = jnp.split(h, 2, axis=-1)
    gelu_gate = 0.5 * gate * (1.0 + jax.lax.erf(gate / jnp.sqrt(2.0)))
    act = hidden * gelu_gate
    y = act @ w2.astype(jnp.float32) + b2.astype(jnp.float32)
    return y.astype(x.dtype)


def _make_params(key, dim, inner, dim_out, dtype=jnp.float32):
    kw1, kb1, kw2, kb2 = jax.random.split(key, 4)
    w1 = (jax.random.normal(kw1, (dim, 2 * inner), dtype=jnp.float32) * 0.05).astype(dtype)
    b1 = (jax.random.normal(kb1, (2 * inner,), dtype=jnp.float32) * 0.05).astype(dtype)
    w2 = (jax.random.normal(kw2, (inner, dim_out), dtype=jnp.float32) * 0.05).astype(dtype)
    b2 = (jax.random.normal(kb2, (dim_out,), dtype=jnp.float32) * 0.05).astype(dtype)
    return w1, b1, w2, b2


if __name__ == "__main__":
    key = jax.random.PRNGKey(0)
    k1, k2, kp1, kp2 = jax.random.split(key, 4)

    # Test 1: FeedForward(dim=32, mult=4, 'geglu') on (B=2, S=8, dim=32), auto tiles.
    B, S, dim = 2, 8, 32
    inner, dim_out = dim * 4, dim  # 128, 32
    x = jax.random.normal(k1, (B, S, dim), dtype=jnp.float32)
    w1, b1, w2, b2 = _make_params(kp1, dim, inner, dim_out)
    y = jax.block_until_ready(feed_forward_geglu(x, w1, b1, w2, b2))
    y_ref = _reference_ffn(x, w1, b1, w2, b2)
    assert y.shape == (B, S, dim_out)
    assert jnp.allclose(y, y_ref, atol=1e-4, rtol=1e-4), "mismatch vs reference (test 1)"

    # Test 2: exercise the 2-D grid (multiple row tiles + inner chunks), row padding,
    # and the index-map-based hidden/gate addressing of the shared W1/b1 operands.
    B2, S2, dim2 = 2, 13, 32           # M = 26 -> padded to 32 with tm=8
    inner2, dim_out2 = dim2 * 8, dim2  # 256 -> 2 inner chunks with tc=128
    x2 = jax.random.normal(k2, (B2, S2, dim2), dtype=jnp.float32)
    w1_2, b1_2, w2_2, b2_2 = _make_params(kp2, dim2, inner2, dim_out2)
    y2 = jax.block_until_ready(feed_forward_geglu(x2, w1_2, b1_2, w2_2, b2_2, tm=8, tc=128))
    y2_ref = _reference_ffn(x2, w1_2, b1_2, w2_2, b2_2)
    assert y2.shape == (B2, S2, dim_out2)
    assert jnp.allclose(y2, y2_ref, atol=1e-4, rtol=1e-4), "mismatch vs reference (test 2)"

    print("KERNEL_OK")
</pallas_src>

<mosaic_0001>
module attributes {stable_mosaic.version = 11 : i64} {
  func.func @_ffn_geglu_kernel(%arg0: i32, %arg1: i32, %arg2: memref<16x32xf32, #tpu.memory_space<vmem>>, %arg3: memref<32x128xf32, #tpu.memory_space<vmem>>, %arg4: memref<1x128xf32, #tpu.memory_space<vmem>>, %arg5: memref<32x128xf32, #tpu.memory_space<vmem>>, %arg6: memref<1x128xf32, #tpu.memory_space<vmem>>, %arg7: memref<128x32xf32, #tpu.memory_space<vmem>>, %arg8: memref<1x32xf32, #tpu.memory_space<vmem>>, %arg9: memref<16x32xf32, #tpu.memory_space<vmem>>, %arg10: memref<16x32xf32, #tpu.memory_space<vmem>>) attributes {dimension_semantics = [#tpu.dimension_semantics<parallel>, #tpu.dimension_semantics<arbitrary>], iteration_bounds = array<i64: 1, 1>, scalar_prefetch = 0 : i64, scratch_operands = 1 : i64, tpu.core_type = #tpu.core_type<tc>, window_params = [{transform_indices = @transform_0, window_bounds = array<i64: 16, 32>}, {transform_indices = @transform_1, window_bounds = array<i64: 32, 128>}, {transform_indices = @transform_2, window_bounds = array<i64: 1, 128>}, {transform_indices = @transform_3, window_bounds = array<i64: 32, 128>}, {transform_indices = @transform_4, window_bounds = array<i64: 1, 128>}, {transform_indices = @transform_5, window_bounds = array<i64: 128, 32>}, {pipeline_mode = #tpu.pipeline_mode<synchronous>, transform_indices = @transform_6, window_bounds = array<i64: 1, 32>}, {transform_indices = @transform_7, window_bounds = array<i64: 16, 32>}]} {
    %c0_i32 = arith.constant 0 : i32
    %0 = arith.cmpi eq, %arg1, %c0_i32 : i32
    %1 = arith.extui %0 : i1 to i32
    %c0_i32_0 = arith.constant 0 : i32
    %2 = arith.cmpi ne, %1, %c0_i32_0 : i32
    scf.if %2 {
      %cst_23 = arith.constant 0.000000e+00 : f32
      %31 = vector.broadcast %cst_23 : f32 to vector<16x32xf32>
      %c0_24 = arith.constant 0 : index
      %c0_25 = arith.constant 0 : index
      %32 = vector.load %arg10[%c0_24, %c0_25] : memref<16x32xf32, #tpu.memory_space<vmem>>, vector<16x32xf32>
      tpu.vector_store %arg10[%c0_24, %c0_25], %31 {strides = array<i32>} : memref<16x32xf32, #tpu.memory_space<vmem>>, vector<16x32xf32>,
    } else {
    }
    %c0 = arith.constant 0 : index
    %c0_1 = arith.constant 0 : index
    %3 = vector.load %arg2[%c0, %c0_1] : memref<16x32xf32, #tpu.memory_space<vmem>>, vector<16x32xf32>
    %c0_2 = arith.constant 0 : index
    %c0_3 = arith.constant 0 : index
    %4 = vector.load %arg3[%c0_2, %c0_3] : memref<32x128xf32, #tpu.memory_space<vmem>>, vector<32x128xf32>
    %cst = arith.constant dense<0.000000e+00> : vector<16x128xf32>
    %5 = tpu.matmul %3, %4, %cst {dimension_numbers = #tpu.dot_dimension_numbers<[1], [0], [0], [1], [0, 0, 1, 1], [], []>} : vector<16x32xf32>, vector<32x128xf32>, vector<16x128xf32> -> vector<16x128xf32>
    %c0_4 = arith.constant 0 : index
    %c0_5 = arith.constant 0 : index
    %6 = vector.load %arg4[%c0_4, %c0_5] : memref<1x128xf32, #tpu.memory_space<vmem>>, vector<1x128xf32>
    %7 = vector.broadcast %6 : vector<1x128xf32> to vector<16x128xf32>
    %8 = arith.addf %5, %7 : vector<16x128xf32>
    %c0_6 = arith.constant 0 : index
    %c0_7 = arith.constant 0 : index
    %9 = vector.load %arg5[%c0_6, %c0_7] : memref<32x128xf32, #tpu.memory_space<vmem>>, vector<32x128xf32>
    %cst_8 = arith.constant dense<0.000000e+00> : vector<16x128xf32>
    %10 = tpu.matmul %3, %9, %cst_8 {dimension_numbers = #tpu.dot_dimension_numbers<[1], [0], [0], [1], [0, 0, 1, 1], [], []>} : vector<16x32xf32>, vector<32x128xf32>, vector<16x128xf32> -> vector<16x128xf32>
    %c0_9 = arith.constant 0 : index
    %c0_10 = arith.constant 0 : index
    %11 = vector.load %arg6[%c0_9, %c0_10] : memref<1x128xf32, #tpu.memory_space<vmem>>, vector<1x128xf32>
    %12 = vector.broadcast %11 : vector<1x128xf32> to vector<16x128xf32>
    %13 = arith.addf %10, %12 : vector<16x128xf32>
    %cst_11 = arith.constant 5.000000e-01 : f32
    %14 = vector.broadcast %cst_11 : f32 to vector<16x128xf32>
    %15 = arith.mulf %14, %13 : vector<16x128xf32>
    %cst_12 = arith.constant 0.707106769 : f32
    %16 = vector.broadcast %cst_12 : f32 to vector<16x128xf32>
    %17 = arith.mulf %13, %16 : vector<16x128xf32>
    %18 = math.erf %17 : vector<16x128xf32>
    %cst_13 = arith.constant 1.000000e+00 : f32
    %19 = vector.broadcast %cst_13 : f32 to vector<16x128xf32>
    %20 = arith.addf %19, %18 : vector<16x128xf32>
    %21 = arith.mulf %15, %20 : vector<16x128xf32>
    %22 = arith.mulf %8, %21 : vector<16x128xf32>
    %c0_14 = arith.constant 0 : index
    %c0_15 = arith.constant 0 : index
    %23 = vector.load %arg10[%c0_14, %c0_15] : memref<16x32xf32, #tpu.memory_space<vmem>>, vector<16x32xf32>
    %c0_16 = arith.constant 0 : index
    %c0_17 = arith.constant 0 : index
    %24 = vector.load %arg7[%c0_16, %c0_17] : memref<128x32xf32, #tpu.memory_space<vmem>>, vector<128x32xf32>
    %cst_18 = arith.constant dense<0.000000e+00> : vector<16x32xf32>
    %25 = tpu.matmul %22, %24, %cst_18 {dimension_numbers = #tpu.dot_dimension_numbers<[1], [0], [0], [1], [0, 0, 1, 1], [], []>} : vector<16x128xf32>, vector<128x32xf32>, vector<16x32xf32> -> vector<16x32xf32>
    %26 = arith.addf %23, %25 : vector<16x32xf32>
    %c0_19 = arith.constant 0 : index
    %c0_20 = arith.constant 0 : index
    %27 = vector.load %arg10[%c0_19, %c0_20] : memref<16x32xf32, #tpu.memory_space<vmem>>, vector<16x32xf32>
    tpu.vector_store %arg10[%c0_19, %c0_20], %26 {strides = array<i32>} : memref<16x32xf32, #tpu.memory_space<vmem>>, vector<16x32xf32>,
    %c0_i32_21 = arith.constant 0 : i32
    %28 = arith.cmpi eq, %arg1, %c0_i32_21 : i32
    %29 = arith.extui %28 : i1 to i32
    %c0_i32_22 = arith.constant 0 : i32
    %30 = arith.cmpi ne, %29, %c0_i32_22 : i32
    scf.if %30 {
      %c0_23 = arith.constant 0 : index
      %c0_24 = arith.constant 0 : index
      %31 = vector.load %arg10[%c0_23, %c0_24] : memref<16x32xf32, #tpu.memory_space<vmem>>, vector<16x32xf32>
      %c0_25 = arith.constant 0 : index
      %c0_26 = arith.constant 0 : index
      %32 = vector.load %arg8[%c0_25, %c0_26] : memref<1x32xf32, #tpu.memory_space<vmem>>, vector<1x32xf32>
      %33 = vector.broadcast %32 : vector<1x32xf32> to vector<16x32xf32>
      %34 = arith.addf %31, %33 : vector<16x32xf32>
      %c0_27 = arith.constant 0 : index
      %c0_28 = arith.constant 0 : index
      %35 = vector.load %arg9[%c0_27, %c0_28] : memref<16x32xf32, #tpu.memory_space<vmem>>, vector<16x32xf32>
      tpu.vector_store %arg9[%c0_27, %c0_28], %34 {strides = array<i32>} : memref<16x32xf32, #tpu.memory_space<vmem>>, vector<16x32xf32>,
    } else {
    }
    return
  }
  func.func @transform_0(%arg0: i32, %arg1: i32) -> (i32, i32) {
    %c0_i32 = arith.constant 0 : i32
    %c0_i32_0 = arith.constant 0 : i32
    return %arg0, %c0_i32 : i32, i32
  }
  func.func @transform_1(%arg0: i32, %arg1: i32) -> (i32, i32) {
    %c0_i32 = arith.constant 0 : i32
    %c0_i32_0 = arith.constant 0 : i32
    return %c0_i32, %arg1 : i32, i32
  }
  func.func @transform_2(%arg0: i32, %arg1: i32) -> (i32, i32) {
    %c0_i32 = arith.constant 0 : i32
    %c0_i32_0 = arith.constant 0 : i32
    return %c0_i32, %arg1 : i32, i32
  }
  func.func @transform_3(%arg0: i32, %arg1: i32) -> (i32, i32) {
    %c1_i32 = arith.constant 1 : i32
    %0 = arith.addi %arg1, %c1_i32 : i32
    %c0_i32 = arith.constant 0 : i32
    %c0_i32_0 = arith.constant 0 : i32
    return %c0_i32, %0 : i32, i32
  }
  func.func @transform_4(%arg0: i32, %arg1: i32) -> (i32, i32) {
    %c1_i32 = arith.constant 1 : i32
    %0 = arith.addi %arg1, %c1_i32 : i32
    %c0_i32 = arith.constant 0 : i32
    %c0_i32_0 = arith.constant 0 : i32
    return %c0_i32, %0 : i32, i32
  }
  func.func @transform_5(%arg0: i32, %arg1: i32) -> (i32, i32) {
    %c0_i32 = arith.constant 0 : i32
    %c0_i32_0 = arith.constant 0 : i32
    return %arg1, %c0_i32 : i32, i32
  }
  func.func @transform_6(%arg0: i32, %arg1: i32) -> (i32, i32) {
    %c0_i32 = arith.constant 0 : i32
    %c0_i32_0 = arith.constant 0 : i32
    %c0_i32_1 = arith.constant 0 : i32
    return %c0_i32, %c0_i32_0 : i32, i32
  }
  func.func @transform_7(%arg0: i32, %arg1: i32) -> (i32, i32) {
    %c0_i32 = arith.constant 0 : i32
    %c0_i32_0 = arith.constant 0 : i32
    return %arg0, %c0_i32 : i32, i32
  }
}

</mosaic_0001>

<llo_original>
// kernel: tpu_custom_call.1
$region0: #{tpu_custom_call.1}
  #allocation0 [shape = 'u32[]', space=smem, size = 0x4, offset = 0x4, fixed_abs, tag = 'smem constant byte address 0x4 - core index']
  #allocation1 [shape = 'u32[144,128]{1,0:T(1,128)}', space=vmem, size = 0x12000, scoped, tag = 'internal scratch']
  #allocation2 [shape = 'f32[16,32]{1,0:T(8,128)}', space=vmem, size = 0x2000, scoped, tag = 'scratch operand']
  %s0 = inlined_call_operand.vmem [shape: f32[16,32], index: 0, kind: input, shape index: {}]
  %s1 = inlined_call_operand.vmem [shape: f32[32,256], index: 1, kind: input, shape index: {}]
  %s2 = inlined_call_operand.vmem [shape: f32[1,256], index: 2, kind: input, shape index: {}]
  %s3 = inlined_call_operand.vmem [shape: f32[32,256], index: 3, kind: input, shape index: {}]
  %s4 = inlined_call_operand.vmem [shape: f32[1,256], index: 4, kind: input, shape index: {}]
  %s5 = inlined_call_operand.vmem [shape: f32[128,32], index: 5, kind: input, shape index: {}]
  %s6 = inlined_call_operand.vmem [shape: f32[1,32], index: 6, kind: input, shape index: {}]
  %s7 = inlined_call_operand.hbm [shape: f32[16,32], index: 7, kind: output, shape index: {}]
  %s8 = sld [smem:[#allocation0]]
  $region122: #{tpu_custom_call.1} parent=0
    _
  %s10 = ssub.s32 1, %s8
  %s11 = scalar_select 0, %s10, %s8
  $region1: #{tpu_custom_call.1} parent=0
    #allocation3 [shape = 'u8[16384]{0}', space=vmem, size = 0x4000, scoped, tag = 'input window, operand 1, single buffered']
    #allocation4 [shape = 'u8[16384]{0}', space=vmem, size = 0x4000, scoped, tag = 'input window, operand 3, single buffered']
    #allocation5 [shape = 'u8[8192]{0}', space=vmem, size = 0x2000, scoped, tag = 'output window, operand 0, single buffered']
    #allocation6 [shape = 's32[1]{0}', space=sflag, size = 0x4, scoped, tag = 'scoped memory for tpu_custom_call.1']
    %12 = vsyncpa [#allocation6], 0
    // Predicated region
    $region2: #{tpu_custom_call.1} parent=1 // pred_check
      _
    $region3: #{tpu_custom_call.1} parent=1 // pred_check_branch
      %14 = sbr.rel (0) target = $region5
    $region4: #{tpu_custom_call.1} parent=1 // pred_region
      _
    $region5: #{tpu_custom_call.1} parent=1 // pred_fallthru
      _
    // Predicated region
    $region6: #{tpu_custom_call.1} parent=1 // pred_check
      _
    $region7: #{tpu_custom_call.1} parent=1 // pred_check_branch
      %16 = sbr.rel (0) target = $region9
    $region8: #{tpu_custom_call.1} parent=1 // pred_region
      // Predicated region
      $region10: #{tpu_custom_call.1} parent=8 // pred_check
        _
      $region11: #{tpu_custom_call.1} parent=8 // pred_check_branch
        %18 = sbr.rel (0) target = $region13
      $region12: #{tpu_custom_call.1} parent=8 // pred_region
        // Predicated region
        $region14: #{tpu_custom_call.1} parent=12 // pred_check
          _
        $region15: #{tpu_custom_call.1} parent=12 // pred_check_branch
          %20 = sbr.rel (0) target = $region17
        $region16: #{tpu_custom_call.1} parent=12 // pred_region
          // Predicated region
          $region29: #{tpu_custom_call.1} parent=16 // pred_check
            _
          $region30: #{tpu_custom_call.1} parent=16 // pred_check_branch
            %42 = sbr.rel (0) target = $region32
          $region31: #{tpu_custom_call.1} parent=16 // pred_region
            loop: start=0, step=1, limit=1
            $region33: #{tpu_custom_call.1} parent=31 // loop_pre_header
              _
            $region34: #{tpu_custom_call.1} parent=31 // loop_header
              %s44 = sphi 0, %s48
              %p45 = scmp.ge.s32.totalorder %s44, 1
              %s49 = sphi %s1, %s1
              %s50 = sphi [#allocation3], [#allocation3]
            $region35: #{tpu_custom_call.1} parent=31 // loop_header_branch
              %47 = sbr.rel (%p45) target = $region39
            $region36: #{tpu_custom_call.1} parent=31 // loop_body
              %v51 = vld [vmem:[%s49] sm:$0xff]
              %52 = vst [vmem:[%s50] sm:$0xff] %v51
              %v53 = vld [vmem:[%s49 + $0x10] sm:$0xff]
              %54 = vst [vmem:[%s50 + $0x8] sm:$0xff] %v53
              %v55 = vld [vmem:[%s49 + $0x20] sm:$0xff]
              %56 = vst [vmem:[%s50 + $0x10] sm:$0xff] %v55
              %v57 = vld [vmem:[%s49 + $0x30] sm:$0xff]
              %58 = vst [vmem:[%s50 + $0x18] sm:$0xff] %v57
            $region37: #{tpu_custom_call.1} parent=31 // loop_footer
              %s48 = sadd.s32 1, %s44
            $region38: #{tpu_custom_call.1} parent=31 // loop_footer_branch
              %43 = sbr.rel target = $region34
            $region39: #{tpu_custom_call.1} parent=31 // loop_exit
              _
          $region32: #{tpu_custom_call.1} parent=16 // pred_fallthru
            _
          // Predicated region
          $region40: #{tpu_custom_call.1} parent=16 // pred_check
            _
          $region41: #{tpu_custom_call.1} parent=16 // pred_check_branch
            %60 = sbr.rel target = $region43
          $region42: #{tpu_custom_call.1} parent=16 // pred_region
            _
          $region43: #{tpu_custom_call.1} parent=16 // pred_fallthru
            _
        $region17: #{tpu_custom_call.1} parent=12 // pred_fallthru
          _
        // Predicated region
        $region18: #{tpu_custom_call.1} parent=12 // pred_check
          _
        $region19: #{tpu_custom_call.1} parent=12 // pred_check_branch
          %22 = sbr.rel target = $region21
        $region20: #{tpu_custom_call.1} parent=12 // pred_region
          %s24 = ssub.s32 256, 1
          loop: start=0, step=1, limit=1
          $region22: #{tpu_custom_call.1} parent=20 // loop_pre_header
            _
          $region23: #{tpu_custom_call.1} parent=20 // loop_header
            %s26 = sphi 0, %s30
            %p27 = scmp.ge.s32.totalorder %s26, 1
            %s31 = sphi %s1, %s1
            %s32 = sphi [#allocation3], [#allocation3]
          $region24: #{tpu_custom_call.1} parent=20 // loop_header_branch
            %29 = sbr.rel (%p27) target = $region28
          $region25: #{tpu_custom_call.1} parent=20 // loop_body
            %v33 = vld [vmem:[%s31] sm:%s24]
            %34 = vst [vmem:[%s32] sm:%s24] %v33
            %v35 = vld [vmem:[%s31 + $0x10] sm:%s24]
            %36 = vst [vmem:[%s32 + $0x8] sm:%s24] %v35
            %v37 = vld [vmem:[%s31 + $0x20] sm:%s24]
            %38 = vst [vmem:[%s32 + $0x10] sm:%s24] %v37
            %v39 = vld [vmem:[%s31 + $0x30] sm:%s24]
            %40 = vst [vmem:[%s32 + $0x18] sm:%s24] %v39
          $region26: #{tpu_custom_call.1} parent=20 // loop_footer
            %s30 = sadd.s32 1, %s26
          $region27: #{tpu_custom_call.1} parent=20 // loop_footer_branch
            %25 = sbr.rel target = $region23
          $region28: #{tpu_custom_call.1} parent=20 // loop_exit
            _
        $region21: #{tpu_custom_call.1} parent=12 // pred_fallthru
          _
      $region13: #{tpu_custom_call.1} parent=8 // pred_fallthru
        _
      %61 = vnop
    $region9: #{tpu_custom_call.1} parent=1 // pred_fallthru
      _
    // Predicated region
    $region44: #{tpu_custom_call.1} parent=1 // pred_check
      _
    $region45: #{tpu_custom_call.1} parent=1 // pred_check_branch
      %63 = sbr.rel (0) target = $region47
    $region46: #{tpu_custom_call.1} parent=1 // pred_region
      _
    $region47: #{tpu_custom_call.1} parent=1 // pred_fallthru
      _
    // Predicated region
    $region48: #{tpu_custom_call.1} parent=1 // pred_check
      _
    $region49: #{tpu_custom_call.1} parent=1 // pred_check_branch
      %65 = sbr.rel (0) target = $region51
    $region50: #{tpu_custom_call.1} parent=1 // pred_region
      %s66 = sadd.s32 0, 1
      %s67 = smul.addr %s66, 8
      %s68 = scalar_lea.vmem %s3, %s67
      // Predicated region
      $region52: #{tpu_custom_call.1} parent=50 // pred_check
        _
      $region53: #{tpu_custom_call.1} parent=50 // pred_check_branch
        %70 = sbr.rel (0) target = $region55
      $region54: #{tpu_custom_call.1} parent=50 // pred_region
        // Predicated region
        $region56: #{tpu_custom_call.1} parent=54 // pred_check
          _
        $region57: #{tpu_custom_call.1} parent=54 // pred_check_branch
          %72 = sbr.rel (0) target = $region59
        $region58: #{tpu_custom_call.1} parent=54 // pred_region
          // Predicated region
          $region71: #{tpu_custom_call.1} parent=58 // pred_check
            _
          $region72: #{tpu_custom_call.1} parent=58 // pred_check_branch
            %94 = sbr.rel (0) target = $region74
          $region73: #{tpu_custom_call.1} parent=58 // pred_region
            loop: start=0, step=1, limit=1
            $region75: #{tpu_custom_call.1} parent=73 // loop_pre_header
              _
            $region76: #{tpu_custom_call.1} parent=73 // loop_header
              %s96 = sphi 0, %s100
              %p97 = scmp.ge.s32.totalorder %s96, 1
              %s101 = sphi %s68, %s68
              %s102 = sphi [#allocation4], [#allocation4]
            $region77: #{tpu_custom_call.1} parent=73 // loop_header_branch
              %99 = sbr.rel (%p97) target = $region81
            $region78: #{tpu_custom_call.1} parent=73 // loop_body
              %v103 = vld [vmem:[%s101] sm:$0xff]
              %104 = vst [vmem:[%s102] sm:$0xff] %v103
              %v105 = vld [vmem:[%s101 + $0x10] sm:$0xff]
              %106 = vst [vmem:[%s102 + $0x8] sm:$0xff] %v105
              %v107 = vld [vmem:[%s101 + $0x20] sm:$0xff]
              %108 = vst [vmem:[%s102 + $0x10] sm:$0xff] %v107
              %v109 = vld [vmem:[%s101 + $0x30] sm:$0xff]
              %110 = vst [vmem:[%s102 + $0x18] sm:$0xff] %v109
            $region79: #{tpu_custom_call.1} parent=73 // loop_footer
              %s100 = sadd.s32 1, %s96
            $region80: #{tpu_custom_call.1} parent=73 // loop_footer_branch
              %95 = sbr.rel target = $region76
            $region81: #{tpu_custom_call.1} parent=73 // loop_exit
              _
          $region74: #{tpu_custom_call.1} parent=58 // pred_fallthru
            _
          // Predicated region
          $region82: #{tpu_custom_call.1} parent=58 // pred_check
            _
          $region83: #{tpu_custom_call.1} parent=58 // pred_check_branch
            %112 = sbr.rel target = $region85
          $region84: #{tpu_custom_call.1} parent=58 // pred_region
            _
          $region85: #{tpu_custom_call.1} parent=58 // pred_fallthru
            _
        $region59: #{tpu_custom_call.1} parent=54 // pred_fallthru
          _
        // Predicated region
        $region60: #{tpu_custom_call.1} parent=54 // pred_check
          _
        $region61: #{tpu_custom_call.1} parent=54 // pred_check_branch
          %74 = sbr.rel target = $region63
        $region62: #{tpu_custom_call.1} parent=54 // pred_region
          %s76 = ssub.s32 256, 1
          loop: start=0, step=1, limit=1
          $region64: #{tpu_custom_call.1} parent=62 // loop_pre_header
            _
          $region65: #{tpu_custom_call.1} parent=62 // loop_header
            %s78 = sphi 0, %s82
            %p79 = scmp.ge.s32.totalorder %s78, 1
            %s83 = sphi %s68, %s68
            %s84 = sphi [#allocation4], [#allocation4]
          $region66: #{tpu_custom_call.1} parent=62 // loop_header_branch
            %81 = sbr.rel (%p79) target = $region70
          $region67: #{tpu_custom_call.1} parent=62 // loop_body
            %v85 = vld [vmem:[%s83] sm:%s76]
            %86 = vst [vmem:[%s84] sm:%s76] %v85
            %v87 = vld [vmem:[%s83 + $0x10] sm:%s76]
            %88 = vst [vmem:[%s84 + $0x8] sm:%s76] %v87
            %v89 = vld [vmem:[%s83 + $0x20] sm:%s76]
            %90 = vst [vmem:[%s84 + $0x10] sm:%s76] %v89
            %v91 = vld [vmem:[%s83 + $0x30] sm:%s76]
            %92 = vst [vmem:[%s84 + $0x18] sm:%s76] %v91
          $region68: #{tpu_custom_call.1} parent=62 // loop_footer
            %s82 = sadd.s32 1, %s78
          $region69: #{tpu_custom_call.1} parent=62 // loop_footer_branch
            %77 = sbr.rel target = $region65
          $region70: #{tpu_custom_call.1} parent=62 // loop_exit
            _
        $region63: #{tpu_custom_call.1} parent=54 // pred_fallthru
          _
      $region55: #{tpu_custom_call.1} parent=50 // pred_fallthru
        _
      %113 = vnop
    $region51: #{tpu_custom_call.1} parent=1 // pred_fallthru
      _
    // Predicated region
    $region86: #{tpu_custom_call.1} parent=1 // pred_check
      _
    $region87: #{tpu_custom_call.1} parent=1 // pred_check_branch
      %115 = sbr.rel (0) target = $region89
    $region88: #{tpu_custom_call.1} parent=1 // pred_region
      %s116 = sadd.s32 0, 1
      %p117 = scmp.lt.s32.totalorder %s116, 1
      %s118 = scalar_select %p117, %s116, 1
      %s119 = scalar_lea.vmem %s4, %s118
      %s120 = sadd.s32 0, 1
    $region89: #{tpu_custom_call.1} parent=1 // pred_fallthru
      _
    // Predicated region
    $region90: #{tpu_custom_call.1} parent=1 // pred_check
      _
    $region91: #{tpu_custom_call.1} parent=1 // pred_check_branch
      %122 = sbr.rel (0) target = $region93
    $region92: #{tpu_custom_call.1} parent=1 // pred_region
      _
    $region93: #{tpu_custom_call.1} parent=1 // pred_fallthru
      _
    // Predicated region
    $region94: #{tpu_custom_call.1} parent=1 // pred_check
      _
    $region95: #{tpu_custom_call.1} parent=1 // pred_check_branch
      %124 = sbr.rel (0) target = $region97
    $region96: #{tpu_custom_call.1} parent=1 // pred_region
      _
    $region97: #{tpu_custom_call.1} parent=1 // pred_fallthru
      _
    // Predicated region
    $region98: #{tpu_custom_call.1} parent=1 // pred_check
      _
    $region99: #{tpu_custom_call.1} parent=1 // pred_check_branch
      %126 = sbr.rel (0) target = $region101
    $region100: #{tpu_custom_call.1} parent=1 // pred_region
      _
    $region101: #{tpu_custom_call.1} parent=1 // pred_fallthru
      _
    // Predicated region
    $region102: #{tpu_custom_call.1} parent=1 // pred_check
      _
    $region103: #{tpu_custom_call.1} parent=1 // pred_check_branch
      %128 = sbr.rel (0) target = $region105
    $region104: #{tpu_custom_call.1} parent=1 // pred_region
      _
    $region105: #{tpu_custom_call.1} parent=1 // pred_fallthru
      _
    %s129 = sadd.s32 0, 1
    %p130 = scmp.lt.s32.totalorder %s129, 1
    %s131 = scalar_select %p130, %s129, 1
    %s132 = scalar_lea.vmem %s4, %s131
    %s133 = sadd.s32 0, 1
    %s134 = sadd.s32 0, 1
    %p135 = scmp.lt.s32.totalorder %s134, 1
    %s136 = scalar_select %p135, %s134, 1
    %s137 = scalar_lea.vmem %s4, %s136
    %s138 = sadd.s32 0, 1
    %p139 = scmp.eq.s32.totalorder 0, 0
    // Predicated region
    $region106: #{tpu_custom_call.1} parent=1 // pred_check
      %p140 = pneg %p139
    $region107: #{tpu_custom_call.1} parent=1 // pred_check_branch
      %142 = sbr.rel (%p140) target = $region109
    $region108: #{tpu_custom_call.1} parent=1 // pred_region
      %vm143 = vcmask 261120
      %144 = vst.msk [vmem:[#allocation2] sm:$0xff] %vm143, 0.0
      %145 = vst.msk [vmem:[#allocation2 + $0x8] sm:$0xff] %vm143, 0.0
    $region109: #{tpu_custom_call.1} parent=1 // pred_fallthru
      _
    %v146 = vld [vmem:[%s0] sm:$0xff]
    %v147 = vld [vmem:[%s0 + $0x8] sm:$0xff]
    %v148 = vld [vmem:[#allocation3] sm:$0xff]
    %v149 = vld [vmem:[#allocation3 + $0x8] sm:$0xff]
    %v150 = vld [vmem:[#allocation3 + $0x10] sm:$0xff]
    %v151 = vld [vmem:[#allocation3 + $0x18] sm:$0xff]
    %v152 = vld [vmem:[%s2] sm:$0x1]
    %v154 = vlaneseq
    %v155 = vshrl.u32 %v154, 7
    %v156 = vsub.s32 0, %v155
    %v157 = vrot.slane %v152, %v156
    %vm159 = vcmask 261120
    %v161 = vsel %vm159, %v146, 0
    %v164 = vsel %vm159, %v147, 0
    %166 = vmatprep.subr.mxu0 0.0
    %167 = vmatpush1.msra.mxu0 0.0
    %168 = vmatprep.subr.mxu0 0.0
    %169 = vmatpush1.msra.mxu0 0.0
    %170 = vmatprep.subr.mxu0 0.0
    %171 = vmatpush1.msra.mxu0 0.0
    %172 = vmatprep.subr.mxu0 0.0
    %173 = vmatpush1.msra.mxu0 0.0
    %174 = vmatprep.subr.mxu0 0.0
    %175 = vmatpush1.msra.mxu0 0.0
    %176 = vmatprep.subr.mxu0 0.0
    %177 = vmatpush1.msra.mxu0 0.0
    %178 = vmatprep.subr.mxu0 0.0
    %179 = vmatpush1.msra.mxu0 0.0
    %180 = vmatprep.subr.mxu0 0.0
    %181 = vmatpush1.msra.mxu0 0.0
    %182 = vmatprep.subr.mxu0 0.0
    %183 = vmatpush1.msra.mxu0 0.0
    %184 = vmatprep.subr.mxu0 0.0
    %185 = vmatpush1.msra.mxu0 0.0
    %186 = vmatprep.subr.mxu0 0.0
    %187 = vmatpush1.msra.mxu0 0.0
    %188 = vmatprep.subr.mxu0 0.0
    %189 = vmatpush1.msra.mxu0 0.0
    %190 = vmatprep.subr.mxu0 0.0
    %191 = vmatpush1.msra.mxu0 %v151
    %192 = vmatprep.subr.mxu0 0.0
    %193 = vmatpush1.msra.mxu0 %v150
    %194 = vmatprep.subr.mxu0 0.0
    %195 = vmatpush1.msra.mxu0 %v149
    %196 = vmatprep.subr.mxu0 0.0
    %197 = vmatpush1.msra.mxu0 %v148
    %198 = vmatprep.subr.mxu0 0.0
    %199 = vmatpush2.msra.mxu0 0.0
    %200 = vmatprep.subr.mxu0 0.0
    %201 = vmatpush2.msra.mxu0 0.0
    %202 = vmatprep.subr.mxu0 0.0
    %203 = vmatpush2.msra.mxu0 0.0
    %204 = vmatprep.subr.mxu0 0.0
    %205 = vmatpush2.msra.mxu0 0.0
    %206 = vmatprep.subr.mxu0 0.0
    %207 = vmatpush2.msra.mxu0 0.0
    %208 = vmatprep.subr.mxu0 0.0
    %209 = vmatpush2.msra.mxu0 0.0
    %210 = vmatprep.subr.mxu0 0.0
    %211 = vmatpush2.msra.mxu0 0.0
    %212 = vmatprep.subr.mxu0 0.0
    %213 = vmatpush2.msra.mxu0 0.0
    %214 = vmatprep.subr.mxu0 0.0
    %215 = vmatpush2.msra.mxu0 0.0
    %216 = vmatprep.subr.mxu0 0.0
    %217 = vmatpush2.msra.mxu0 0.0
    %218 = vmatprep.subr.mxu0 0.0
    %219 = vmatpush2.msra.mxu0 0.0
    %220 = vmatprep.subr.mxu0 0.0
    %221 = vmatpush2.msra.mxu0 0.0
    %222 = vmatprep.subr.mxu0 0.0
    %223 = vmatpush2.msra.mxu0 0.0
    %224 = vmatprep.subr.mxu0 0.0
    %225 = vmatpush2.msra.mxu0 0.0
    %226 = vmatprep.subr.mxu0 0.0
    %227 = vmatpush2.msra.mxu0 0.0
    %228 = vmatprep.subr.mxu0 0.0
    %229 = vmatpush2.msra.mxu0 0.0
    %230 = vmatprep.mubr.f32.mxu0 0.0
    %231 = vmatmul.mubr.f32.gmra.mxu0 %v161
    %v232 = vpop.f32.mrf.mxu0
    %v233 = vadd.f32 %v157, %v232
    %v234 = vpop.f32.mrf.mxu0
    %235 = vmatprep.mubr.f32.mxu0 0.0
    %236 = vmatmul.mubr.f32.gmra.mxu0 %v164
    %v237 = vpop.f32.mrf.mxu0
    %v238 = vadd.f32 %v157, %v237
    %v239 = vpop.f32.mrf.mxu0
    %240 = vdwg.mxu0
    %v241 = vld [vmem:[#allocation4] sm:$0xff]
    %v242 = vld [vmem:[#allocation4 + $0x8] sm:$0xff]
    %v243 = vld [vmem:[#allocation4 + $0x10] sm:$0xff]
    %v244 = vld [vmem:[#allocation4 + $0x18] sm:$0xff]
    %v245 = vld [vmem:[%s137] sm:$0x1]
    %v247 = vlaneseq
    %v248 = vshrl.u32 %v247, 7
    %v249 = vsub.s32 0, %v248
    %v250 = vrot.slane %v245, %v249
    %252 = vmatprep.subr.mxu0 0.0
    %253 = vmatpush1.msra.mxu0 0.0
    %254 = vmatprep.subr.mxu0 0.0
    %255 = vmatpush1.msra.mxu0 0.0
    %256 = vmatprep.subr.mxu0 0.0
    %257 = vmatpush1.msra.mxu0 0.0
    %258 = vmatprep.subr.mxu0 0.0
    %259 = vmatpush1.msra.mxu0 0.0
    %260 = vmatprep.subr.mxu0 0.0
    %261 = vmatpush1.msra.mxu0 0.0
    %262 = vmatprep.subr.mxu0 0.0
    %263 = vmatpush1.msra.mxu0 0.0
    %264 = vmatprep.subr.mxu0 0.0
    %265 = vmatpush1.msra.mxu0 0.0
    %266 = vmatprep.subr.mxu0 0.0
    %267 = vmatpush1.msra.mxu0 0.0
    %268 = vmatprep.subr.mxu0 0.0
    %269 = vmatpush1.msra.mxu0 0.0
    %270 = vmatprep.subr.mxu0 0.0
    %271 = vmatpush1.msra.mxu0 0.0
    %272 = vmatprep.subr.mxu0 0.0
    %273 = vmatpush1.msra.mxu0 0.0
    %274 = vmatprep.subr.mxu0 0.0
    %275 = vmatpush1.msra.mxu0 0.0
    %276 = vmatprep.subr.mxu0 0.0
    %277 = vmatpush1.msra.mxu0 %v244
    %278 = vmatprep.subr.mxu0 0.0
    %279 = vmatpush1.msra.mxu0 %v243
    %280 = vmatprep.subr.mxu0 0.0
    %281 = vmatpush1.msra.mxu0 %v242
    %282 = vmatprep.subr.mxu0 0.0
    %283 = vmatpush1.msra.mxu0 %v241
    %284 = vmatprep.subr.mxu0 0.0
    %285 = vmatpush2.msra.mxu0 0.0
    %286 = vmatprep.subr.mxu0 0.0
    %287 = vmatpush2.msra.mxu0 0.0
    %288 = vmatprep.subr.mxu0 0.0
    %289 = vmatpush2.msra.mxu0 0.0
    %290 = vmatprep.subr.mxu0 0.0
    %291 = vmatpush2.msra.mxu0 0.0
    %292 = vmatprep.subr.mxu0 0.0
    %293 = vmatpush2.msra.mxu0 0.0
    %294 = vmatprep.subr.mxu0 0.0
    %295 = vmatpush2.msra.mxu0 0.0
    %296 = vmatprep.subr.mxu0 0.0
    %297 = vmatpush2.msra.mxu0 0.0
    %298 = vmatprep.subr.mxu0 0.0
    %299 = vmatpush2.msra.mxu0 0.0
    %300 = vmatprep.subr.mxu0 0.0
    %301 = vmatpush2.msra.mxu0 0.0
    %302 = vmatprep.subr.mxu0 0.0
    %303 = vmatpush2.msra.mxu0 0.0
    %304 = vmatprep.subr.mxu0 0.0
    %305 = vmatpush2.msra.mxu0 0.0
    %306 = vmatprep.subr.mxu0 0.0
    %307 = vmatpush2.msra.mxu0 0.0
    %308 = vmatprep.subr.mxu0 0.0
    %309 = vmatpush2.msra.mxu0 0.0
    %310 = vmatprep.subr.mxu0 0.0
    %311 = vmatpush2.msra.mxu0 0.0
    %312 = vmatprep.subr.mxu0 0.0
    %313 = vmatpush2.msra.mxu0 0.0
    %314 = vmatprep.subr.mxu0 0.0
    %315 = vmatpush2.msra.mxu0 0.0
    %316 = vmatprep.mubr.f32.mxu0 0.0
    %317 = vmatmul.mubr.f32.gmra.mxu0 %v161
    %v318 = vpop.f32.mrf.mxu0
    %v319 = vadd.f32 %v250, %v318
    %v320 = vpop.f32.mrf.mxu0
    %321 = vmatprep.mubr.f32.mxu0 0.0
    %322 = vmatmul.mubr.f32.gmra.mxu0 %v164
    %v323 = vpop.f32.mrf.mxu0
    %v324 = vadd.f32 %v250, %v323
    %v325 = vpop.f32.mrf.mxu0
    %326 = vdwg.mxu0
    %v327 = vmul.f32 %v319, 0.5
    %v328 = vmul.f32 %v324, 0.5
    %v329 = vmul.f32 %v319, 0.70710677
    %v330 = vmul.f32 %v324, 0.70710677
    %v331 = verf.f32.pop %v329
    %v332 = verf.f32.pop %v330
    %v333 = vadd.f32 %v331, 1.0
    %v334 = vadd.f32 %v332, 1.0
    %v335 = vmul.f32 %v327, %v333
    %v336 = vmul.f32 %v328, %v334
    %v337 = vmul.f32 %v233, %v335
    %v338 = vmul.f32 %v238, %v336
    %v339 = vld [vmem:[#allocation2] sm:$0xff]
    %v340 = vld [vmem:[#allocation2 + $0x8] sm:$0xff]
    %v341 = vld [vmem:[%s5] sm:$0xff]
    %v342 = vld [vmem:[%s5 + $0x8] sm:$0xff]
    %v343 = vld [vmem:[%s5 + $0x10] sm:$0xff]
    %v344 = vld [vmem:[%s5 + $0x18] sm:$0xff]
    %v345 = vld [vmem:[%s5 + $0x20] sm:$0xff]
    %v346 = vld [vmem:[%s5 + $0x28] sm:$0xff]
    %v347 = vld [vmem:[%s5 + $0x30] sm:$0xff]
    %v348 = vld [vmem:[%s5 + $0x38] sm:$0xff]
    %v349 = vld [vmem:[%s5 + $0x40] sm:$0xff]
    %v350 = vld [vmem:[%s5 + $0x48] sm:$0xff]
    %v351 = vld [vmem:[%s5 + $0x50] sm:$0xff]
    %v352 = vld [vmem:[%s5 + $0x58] sm:$0xff]
    %v353 = vld [vmem:[%s5 + $0x60] sm:$0xff]
    %v354 = vld [vmem:[%s5 + $0x68] sm:$0xff]
    %v355 = vld [vmem:[%s5 + $0x70] sm:$0xff]
    %v356 = vld [vmem:[%s5 + $0x78] sm:$0xff]
    %357 = vmatprep.subr.mxu0 0.0
    %358 = vmatpush1.msra.mxu0 %v356
    %359 = vmatprep.subr.mxu0 0.0
    %360 = vmatpush1.msra.mxu0 %v355
    %361 = vmatprep.subr.mxu0 0.0
    %362 = vmatpush1.msra.mxu0 %v354
    %363 = vmatprep.subr.mxu0 0.0
    %364 = vmatpush1.msra.mxu0 %v353
    %365 = vmatprep.subr.mxu0 0.0
    %366 = vmatpush1.msra.mxu0 %v352
    %367 = vmatprep.subr.mxu0 0.0
    %368 = vmatpush1.msra.mxu0 %v351
    %369 = vmatprep.subr.mxu0 0.0
    %370 = vmatpush1.msra.mxu0 %v350
    %371 = vmatprep.subr.mxu0 0.0
    %372 = vmatpush1.msra.mxu0 %v349
    %373 = vmatprep.subr.mxu0 0.0
    %374 = vmatpush1.msra.mxu0 %v348
    %375 = vmatprep.subr.mxu0 0.0
    %376 = vmatpush1.msra.mxu0 %v347
    %377 = vmatprep.subr.mxu0 0.0
    %378 = vmatpush1.msra.mxu0 %v346
    %379 = vmatprep.subr.mxu0 0.0
    %380 = vmatpush1.msra.mxu0 %v345
    %381 = vmatprep.subr.mxu0 0.0
    %382 = vmatpush1.msra.mxu0 %v344
    %383 = vmatprep.subr.mxu0 0.0
    %384 = vmatpush1.msra.mxu0 %v343
    %385 = vmatprep.subr.mxu0 0.0
    %386 = vmatpush1.msra.mxu0 %v342
    %387 = vmatprep.subr.mxu0 0.0
    %388 = vmatpush1.msra.mxu0 %v341
    %389 = vmatprep.subr.mxu0 0.0
    %390 = vmatpush2.msra.mxu0 0.0
    %391 = vmatprep.subr.mxu0 0.0
    %392 = vmatpush2.msra.mxu0 0.0
    %393 = vmatprep.subr.mxu0 0.0
    %394 = vmatpush2.msra.mxu0 0.0
    %395 = vmatprep.subr.mxu0 0.0
    %396 = vmatpush2.msra.mxu0 0.0
    %397 = vmatprep.subr.mxu0 0.0
    %398 = vmatpush2.msra.mxu0 0.0
    %399 = vmatprep.subr.mxu0 0.0
    %400 = vmatpush2.msra.mxu0 0.0
    %401 = vmatprep.subr.mxu0 0.0
    %402 = vmatpush2.msra.mxu0 0.0
    %403 = vmatprep.subr.mxu0 0.0
    %404 = vmatpush2.msra.mxu0 0.0
    %405 = vmatprep.subr.mxu0 0.0
    %406 = vmatpush2.msra.mxu0 0.0
    %407 = vmatprep.subr.mxu0 0.0
    %408 = vmatpush2.msra.mxu0 0.0
    %409 = vmatprep.subr.mxu0 0.0
    %410 = vmatpush2.msra.mxu0 0.0
    %411 = vmatprep.subr.mxu0 0.0
    %412 = vmatpush2.msra.mxu0 0.0
    %413 = vmatprep.subr.mxu0 0.0
    %414 = vmatpush2.msra.mxu0 0.0
    %415 = vmatprep.subr.mxu0 0.0
    %416 = vmatpush2.msra.mxu0 0.0
    %417 = vmatprep.subr.mxu0 0.0
    %418 = vmatpush2.msra.mxu0 0.0
    %419 = vmatprep.subr.mxu0 0.0
    %420 = vmatpush2.msra.mxu0 0.0
    %421 = vmatprep.mubr.f32.mxu0 0.0
    %422 = vmatmul.mubr.f32.gmra.mxu0 %v337
    %v423 = vpop.f32.mrf.mxu0
    %v424 = vadd.f32 0.0, %v423
    %v425 = vpop.f32.mrf.mxu0
    %426 = vmatprep.mubr.f32.mxu0 0.0
    %427 = vmatmul.mubr.f32.gmra.mxu0 %v338
    %v428 = vpop.f32.mrf.mxu0
    %v429 = vadd.f32 0.0, %v428
    %v430 = vpop.f32.mrf.mxu0
    %431 = vdwg.mxu0
    %v432 = vadd.f32 %v339, %v424
    %v433 = vadd.f32 %v340, %v429
    %434 = vst.msk [vmem:[#allocation2] sm:$0xff] %vm159, %v432
    %435 = vst.msk [vmem:[#allocation2 + $0x8] sm:$0xff] %vm159, %v433
    // Predicated region
    $region110: #{tpu_custom_call.1} parent=1 // pred_check
      %p436 = pneg %p139
    $region111: #{tpu_custom_call.1} parent=1 // pred_check_branch
      %438 = sbr.rel (%p436) target = $region113
    $region112: #{tpu_custom_call.1} parent=1 // pred_region
      %v439 = vld [vmem:[#allocation2] sm:$0xff]
      %v440 = vld [vmem:[#allocation2 + $0x8] sm:$0xff]
      %v441 = vld [vmem:[%s6] sm:$0x1]
      %v443 = vlaneseq
      %v444 = vshrl.u32 %v443, 7
      %v445 = vsub.s32 0, %v444
      %v446 = vrot.slane %v441, %v445
      %v448 = vadd.f32 %v439, %v446
      %v449 = vadd.f32 %v440, %v446
      %450 = vst.msk [vmem:[#allocation5] sm:$0xff] %vm159, %v448
      %451 = vst.msk [vmem:[#allocation5 + $0x8] sm:$0xff] %vm159, %v449
    $region113: #{tpu_custom_call.1} parent=1 // pred_fallthru
      _
    // Predicated region
    $region114: #{tpu_custom_call.1} parent=1 // pred_check
      _
    $region115: #{tpu_custom_call.1} parent=1 // pred_check_branch
      %453 = sbr.rel (0) target = $region117
    $region116: #{tpu_custom_call.1} parent=1 // pred_region
      %s455 = ssub.s32 256, 256
      %456 = vsyncadd [#allocation6], %s455
      %s457 = sshll.u32 [#allocation5], 4
      %s458 = int_to_ptr.vmem [resolvable:$true] %s457
      %463 = dma.vmem_to_hbm [thread:$0]  %s458, 256, %s7, [#allocation6], 128, 128, 8
    $region117: #{tpu_custom_call.1} parent=1 // pred_fallthru
      _
    // Predicated region
    $region118: #{tpu_custom_call.1} parent=1 // pred_check
      _
    $region119: #{tpu_custom_call.1} parent=1 // pred_check_branch
      %465 = sbr.rel (0) target = $region121
    $region120: #{tpu_custom_call.1} parent=1 // pred_region
      %466 = dma.done [#allocation6], 256
    $region121: #{tpu_custom_call.1} parent=1 // pred_fallthru
      _
    %467 = vsyncpa [#allocation6], 1

</llo_original>
